<compile_context>
chip_gen: v6e
topology: v6e:2x2x1
jax: 0.10.0
libtpu: 0.0.40
codegen_flags: <defaults>
</compile_context>

<pallas_src>
import functools

import jax
import jax.numpy as jnp
import numpy as np
from jax import lax
from jax.experimental import pallas as pl
from jax.experimental.pallas import tpu as pltpu

PATCH_SIZE = 3  # matches Geometry(patch_size=3)


def _round_up(n, m):
    return ((n + m - 1) // m) * m


def _geometry_kernel(x_ref, y_ref, mask_ref, out_ref, *, width, pad):
    """x_ref/y_ref: (tb, hw_pad) flattened slices.  mask_ref: (1, hw_pad)
    interior mask.  out_ref: (1, 8, 128) per-step partial sum (broadcast)."""
    x = x_ref[...].astype(jnp.float32)   # (tb, hw_pad)
    y = y_ref[...].astype(jnp.float32)
    mask = mask_ref[...]                 # (1, hw_pad) f32

    acc = jnp.zeros(x.shape, jnp.float32)

    # One representative per +/- offset pair: dy == 0, dx > 0  and  dy > 0,
    # any dx.  For pad == 1 these are flattened shifts {1, w-1, w, w+1}.
    shifts = []
    for dy in range(0, pad + 1):
        lo = 1 if dy == 0 else -pad
        for dx in range(lo, pad + 1):
            shifts.append(dy * width + dx)

    for shift in shifts:
        # One static lane roll per tap per array.  Wrapped values only reach
        # pixels whose combined pair mask is zero (|shift| <= pad*w + pad and
        # the interior mask excludes a pad-wide border + the lane padding).
        sx = pltpu.roll(x, shift, axis=1)
        sy = pltpu.roll(y, shift, axis=1)
        # Combined pair mask, built with the SAME roll as the data so the
        # identity holds whichever direction pltpu.roll shifts.
        m_s = mask + pltpu.roll(mask, shift, axis=1)
        ldx = sx - x
        ldy = sy - y
        nx = ldx * lax.rsqrt(0.81 + ldx * ldx)
        ny = ldy * lax.rsqrt(0.81 + ldy * ldy)
        d = nx - ny
        d2 = d * d
        acc = acc + (d2 * pl.reciprocal(0.1 + d2, approx=True)) * m_s

    partial = jnp.sum(acc)
    # Lane-dense (1, 8, 128) output block; wrapper reads element [i, 0, 0].
    out_ref[...] = jnp.broadcast_to(partial, out_ref.shape)


def _vmem_limit_and_budget():
    """(vmem_limit_bytes, per-input block budget) sized per TPU generation."""
    cap = None
    try:
        info = pltpu.get_tpu_info()
        cap = getattr(info, "vmem_capacity_bytes", None)
    except Exception:
        cap = None
    if not cap:
        cap = 64 << 20  # conservative fallback: v7x per-TensorCore VMEM
    limit = int(min(cap * 3 // 4, 96 << 20))
    # Working set per step ~ 2 inputs x 2 pipeline buffers (native dtype)
    # + ~6 live f32 (tb, hw) temporaries + tiny mask/output blocks.
    budget_per_input = max(limit // 16, 1 << 20)
    return limit, budget_per_input


def _min_grid_blocks():
    """2 on chips with 2 TensorCores (v7x) so the parallel grid can shard."""
    try:
        kind = jax.devices()[0].device_kind.lower()
        if "v7" in kind or "tpu7" in kind:
            return 2
    except Exception:
        pass
    return 1


def _block_rows(bc, hw_pad, itemsize, budget_bytes, min_blocks):
    """Block height (rows of flattened slices) and padded row count."""
    packing = max(1, 4 // itemsize)
    pref = 8 * packing                       # sublane packing for this dtype
    max_tb = max(pref, (budget_bytes // (hw_pad * itemsize)) // pref * pref)
    # Fewest, largest blocks by default (v5e/v6e).  On 2-TC chips split the
    # real rows across >= 2 blocks when there is more than one block's worth
    # of aligned work.
    if min_blocks > 1 and bc > pref:
        target = pl.cdiv(bc, min_blocks)
    else:
        target = bc
    tb = min(max_tb, _round_up(max(target, 1), pref))
    tb = max(tb, pref)
    bc_pad = _round_up(bc, tb)
    return tb, bc_pad


def geometry_loss(x, y, patch_size=PATCH_SIZE):
    """Pallas implementation of Geometry.forward(x, y) -> scalar loss."""
    assert patch_size == PATCH_SIZE
    b, c, h, w = x.shape
    pad = patch_size // 2
    bc, hw = b * c, h * w
    itemsize = int(np.dtype(x.dtype).itemsize)

    hw_pad = _round_up(hw, 128)              # lane-dense flattened rows
    vmem_limit, budget = _vmem_limit_and_budget()
    tb, bc_pad = _block_rows(bc, hw_pad, itemsize, budget, _min_grid_blocks())
    num_blocks = bc_pad // tb

    # DMA inputs in their native dtype; zero padding (rows and lanes)
    # contributes exactly 0 to the masked sum.
    xr = x.reshape(bc, hw)
    yr = y.reshape(bc, hw)
    if bc_pad != bc or hw_pad != hw:
        xr = jnp.pad(xr, ((0, bc_pad - bc), (0, hw_pad - hw)))
        yr = jnp.pad(yr, ((0, bc_pad - bc), (0, hw_pad - hw)))

    # Interior ("valid") mask over the padded flattened lane axis.
    idx = jnp.arange(hw_pad, dtype=jnp.int32)
    hi = idx // w
    wi = idx % w
    valid = ((idx < hw) & (hi >= pad) & (hi < h - pad)
             & (wi >= pad) & (wi < w - pad))
    mask = valid.astype(jnp.float32).reshape(1, hw_pad)

    kernel = functools.partial(_geometry_kernel, width=w, pad=pad)

    n_pairs = ((patch_size * patch_size) - 1) // 2
    n_elems = bc_pad * hw_pad
    cost = pl.CostEstimate(
        flops=int(n_pairs * 14 * n_elems),
        transcendentals=int(n_pairs * 3 * n_elems),
        bytes_accessed=int(2 * n_elems * itemsize
                           + num_blocks * hw_pad * 4
                           + num_blocks * 8 * 128 * 4),
    )

    partials = pl.pallas_call(
        kernel,
        out_shape=jax.ShapeDtypeStruct((num_blocks, 8, 128), jnp.float32),
        grid_spec=pltpu.PrefetchScalarGridSpec(
            num_scalar_prefetch=0,
            grid=(num_blocks,),
            in_specs=[
                pl.BlockSpec((tb, hw_pad), lambda i: (i, 0)),
                pl.BlockSpec((tb, hw_pad), lambda i: (i, 0)),
                pl.BlockSpec((1, hw_pad), lambda i: (0, 0)),
            ],
            out_specs=pl.BlockSpec((1, 8, 128), lambda i: (i, 0, 0)),
        ),
        # Each grid step owns its output block => independent steps =>
        # "parallel" (sharded across both v7x TensorCores when >= 2 blocks).
        compiler_params=pltpu.CompilerParams(
            dimension_semantics=("parallel",),
            vmem_limit_bytes=vmem_limit),
        cost_estimate=cost,
    )(xr, yr, mask)

    total = jnp.sum(partials[:, 0, 0])
    # dist.mean(dim=1) divides by c*patch^2 ; (dist*mask).mean() by b*h*w.
    denom = b * c * (patch_size ** 2) * h * w
    return total / denom


def _reference_loss(x, y, patch_size=PATCH_SIZE):
    """Pure-JAX reference matching the PyTorch semantics exactly."""
    b, c, h, w = x.shape
    pad = patch_size // 2

    def transform(t):
        t_ = t.reshape(b * c, h, w)
        tp = jnp.pad(t_, ((0, 0), (pad, pad), (pad, pad)))
        patches = jnp.stack(
            [tp[:, dy:dy + h, dx:dx + w]
             for dy in range(patch_size) for dx in range(patch_size)], axis=1)
        ld = patches - t_[:, None]
        return ld / jnp.sqrt(0.81 + ld * ld)

    lx = transform(x)
    ly = transform(y)
    diff = lx - ly
    dist = (diff ** 2 / (0.1 + diff ** 2)).reshape(b, c * patch_size ** 2, h, w)
    dist = dist.mean(axis=1)  # (b, h, w)
    mask = jnp.zeros((h, w), x.dtype).at[pad:h - pad, pad:w - pad].set(1.0)
    return (dist * mask).mean()


if __name__ == "__main__":
    key = jax.random.PRNGKey(0)
    kx, ky = jax.random.split(key)
    B, C, H, W = 2, 4, 16, 16
    x = jax.random.normal(kx, (B, C, H, W), dtype=jnp.float32)
    y = jax.random.normal(ky, (B, C, H, W), dtype=jnp.float32)

    loss = geometry_loss(x, y)
    jax.block_until_ready(loss)

    ref = _reference_loss(x, y)
    # pl.reciprocal(approx=True) uses the EUP's approximate reciprocal, so
    # compare with a correspondingly relaxed tolerance (documented bias).
    assert jnp.allclose(loss, ref, rtol=5e-3, atol=1e-5), (loss, ref)

    print("KERNEL_OK")
</pallas_src>

<mosaic_0001>
module attributes {stable_mosaic.version = 11 : i64} {
  func.func @_geometry_kernel(%arg0: i32, %arg1: memref<8x256xf32, #tpu.memory_space<vmem>>, %arg2: memref<8x256xf32, #tpu.memory_space<vmem>>, %arg3: memref<1x256xf32, #tpu.memory_space<vmem>>, %arg4: memref<1x8x128xf32, #tpu.memory_space<vmem>>) attributes {dimension_semantics = [#tpu.dimension_semantics<parallel>], iteration_bounds = array<i64: 1>, scalar_prefetch = 0 : i64, scratch_operands = 0 : i64, tpu.core_type = #tpu.core_type<tc>, window_params = [{transform_indices = @transform_0, window_bounds = array<i64: 8, 256>}, {transform_indices = @transform_1, window_bounds = array<i64: 8, 256>}, {pipeline_mode = #tpu.pipeline_mode<synchronous>, transform_indices = @transform_2, window_bounds = array<i64: 1, 256>}, {transform_indices = @transform_3, window_bounds = array<i64: 1, 8, 128>}]} {
    %c0 = arith.constant 0 : index
    %c0_0 = arith.constant 0 : index
    %0 = vector.load %arg1[%c0, %c0_0] : memref<8x256xf32, #tpu.memory_space<vmem>>, vector<8x256xf32>
    %c0_1 = arith.constant 0 : index
    %c0_2 = arith.constant 0 : index
    %1 = vector.load %arg2[%c0_1, %c0_2] : memref<8x256xf32, #tpu.memory_space<vmem>>, vector<8x256xf32>
    %c0_3 = arith.constant 0 : index
    %c0_4 = arith.constant 0 : index
    %2 = vector.load %arg3[%c0_3, %c0_4] : memref<1x256xf32, #tpu.memory_space<vmem>>, vector<1x256xf32>
    %cst = arith.constant 0.000000e+00 : f32
    %3 = vector.broadcast %cst : f32 to vector<8x256xf32>
    %c1_i32 = arith.constant 1 : i32
    %4 = tpu.dynamic_rotate %0 by %c1_i32 dim 1 : vector<8x256xf32>, i32 -> vector<8x256xf32>
    %c1_i32_5 = arith.constant 1 : i32
    %5 = tpu.dynamic_rotate %1 by %c1_i32_5 dim 1 : vector<8x256xf32>, i32 -> vector<8x256xf32>
    %c1_i32_6 = arith.constant 1 : i32
    %6 = tpu.dynamic_rotate %2 by %c1_i32_6 dim 1 : vector<1x256xf32>, i32 -> vector<1x256xf32>
    %7 = arith.addf %2, %6 : vector<1x256xf32>
    %8 = arith.subf %4, %0 : vector<8x256xf32>
    %9 = arith.subf %5, %1 : vector<8x256xf32>
    %10 = arith.mulf %8, %8 : vector<8x256xf32>
    %cst_7 = arith.constant 8.100000e-01 : f32
    %11 = vector.broadcast %cst_7 : f32 to vector<8x256xf32>
    %12 = arith.addf %11, %10 : vector<8x256xf32>
    %13 = math.rsqrt %12 : vector<8x256xf32>
    %14 = arith.mulf %8, %13 : vector<8x256xf32>
    %15 = arith.mulf %9, %9 : vector<8x256xf32>
    %cst_8 = arith.constant 8.100000e-01 : f32
    %16 = vector.broadcast %cst_8 : f32 to vector<8x256xf32>
    %17 = arith.addf %16, %15 : vector<8x256xf32>
    %18 = math.rsqrt %17 : vector<8x256xf32>
    %19 = arith.mulf %9, %18 : vector<8x256xf32>
    %20 = arith.subf %14, %19 : vector<8x256xf32>
    %21 = arith.mulf %20, %20 : vector<8x256xf32>
    %cst_9 = arith.constant 1.000000e-01 : f32
    %22 = vector.broadcast %cst_9 : f32 to vector<8x256xf32>
    %23 = arith.addf %22, %21 : vector<8x256xf32>
    %24 = tpu.reciprocal %23 {approx = true} : vector<8x256xf32> -> vector<8x256xf32>
    %25 = arith.mulf %21, %24 : vector<8x256xf32>
    %26 = vector.broadcast %7 : vector<1x256xf32> to vector<8x256xf32>
    %27 = arith.mulf %25, %26 : vector<8x256xf32>
    %28 = arith.addf %3, %27 : vector<8x256xf32>
    %c15_i32 = arith.constant 15 : i32
    %29 = tpu.dynamic_rotate %0 by %c15_i32 dim 1 : vector<8x256xf32>, i32 -> vector<8x256xf32>
    %c15_i32_10 = arith.constant 15 : i32
    %30 = tpu.dynamic_rotate %1 by %c15_i32_10 dim 1 : vector<8x256xf32>, i32 -> vector<8x256xf32>
    %c15_i32_11 = arith.constant 15 : i32
    %31 = tpu.dynamic_rotate %2 by %c15_i32_11 dim 1 : vector<1x256xf32>, i32 -> vector<1x256xf32>
    %32 = arith.addf %2, %31 : vector<1x256xf32>
    %33 = arith.subf %29, %0 : vector<8x256xf32>
    %34 = arith.subf %30, %1 : vector<8x256xf32>
    %35 = arith.mulf %33, %33 : vector<8x256xf32>
    %cst_12 = arith.constant 8.100000e-01 : f32
    %36 = vector.broadcast %cst_12 : f32 to vector<8x256xf32>
    %37 = arith.addf %36, %35 : vector<8x256xf32>
    %38 = math.rsqrt %37 : vector<8x256xf32>
    %39 = arith.mulf %33, %38 : vector<8x256xf32>
    %40 = arith.mulf %34, %34 : vector<8x256xf32>
    %cst_13 = arith.constant 8.100000e-01 : f32
    %41 = vector.broadcast %cst_13 : f32 to vector<8x256xf32>
    %42 = arith.addf %41, %40 : vector<8x256xf32>
    %43 = math.rsqrt %42 : vector<8x256xf32>
    %44 = arith.mulf %34, %43 : vector<8x256xf32>
    %45 = arith.subf %39, %44 : vector<8x256xf32>
    %46 = arith.mulf %45, %45 : vector<8x256xf32>
    %cst_14 = arith.constant 1.000000e-01 : f32
    %47 = vector.broadcast %cst_14 : f32 to vector<8x256xf32>
    %48 = arith.addf %47, %46 : vector<8x256xf32>
    %49 = tpu.reciprocal %48 {approx = true} : vector<8x256xf32> -> vector<8x256xf32>
    %50 = arith.mulf %46, %49 : vector<8x256xf32>
    %51 = vector.broadcast %32 : vector<1x256xf32> to vector<8x256xf32>
    %52 = arith.mulf %50, %51 : vector<8x256xf32>
    %53 = arith.addf %28, %52 : vector<8x256xf32>
    %c16_i32 = arith.constant 16 : i32
    %54 = tpu.dynamic_rotate %0 by %c16_i32 dim 1 : vector<8x256xf32>, i32 -> vector<8x256xf32>
    %c16_i32_15 = arith.constant 16 : i32
    %55 = tpu.dynamic_rotate %1 by %c16_i32_15 dim 1 : vector<8x256xf32>, i32 -> vector<8x256xf32>
    %c16_i32_16 = arith.constant 16 : i32
    %56 = tpu.dynamic_rotate %2 by %c16_i32_16 dim 1 : vector<1x256xf32>, i32 -> vector<1x256xf32>
    %57 = arith.addf %2, %56 : vector<1x256xf32>
    %58 = arith.subf %54, %0 : vector<8x256xf32>
    %59 = arith.subf %55, %1 : vector<8x256xf32>
    %60 = arith.mulf %58, %58 : vector<8x256xf32>
    %cst_17 = arith.constant 8.100000e-01 : f32
    %61 = vector.broadcast %cst_17 : f32 to vector<8x256xf32>
    %62 = arith.addf %61, %60 : vector<8x256xf32>
    %63 = math.rsqrt %62 : vector<8x256xf32>
    %64 = arith.mulf %58, %63 : vector<8x256xf32>
    %65 = arith.mulf %59, %59 : vector<8x256xf32>
    %cst_18 = arith.constant 8.100000e-01 : f32
    %66 = vector.broadcast %cst_18 : f32 to vector<8x256xf32>
    %67 = arith.addf %66, %65 : vector<8x256xf32>
    %68 = math.rsqrt %67 : vector<8x256xf32>
    %69 = arith.mulf %59, %68 : vector<8x256xf32>
    %70 = arith.subf %64, %69 : vector<8x256xf32>
    %71 = arith.mulf %70, %70 : vector<8x256xf32>
    %cst_19 = arith.constant 1.000000e-01 : f32
    %72 = vector.broadcast %cst_19 : f32 to vector<8x256xf32>
    %73 = arith.addf %72, %71 : vector<8x256xf32>
    %74 = tpu.reciprocal %73 {approx = true} : vector<8x256xf32> -> vector<8x256xf32>
    %75 = arith.mulf %71, %74 : vector<8x256xf32>
    %76 = vector.broadcast %57 : vector<1x256xf32> to vector<8x256xf32>
    %77 = arith.mulf %75, %76 : vector<8x256xf32>
    %78 = arith.addf %53, %77 : vector<8x256xf32>
    %c17_i32 = arith.constant 17 : i32
    %79 = tpu.dynamic_rotate %0 by %c17_i32 dim 1 : vector<8x256xf32>, i32 -> vector<8x256xf32>
    %c17_i32_20 = arith.constant 17 : i32
    %80 = tpu.dynamic_rotate %1 by %c17_i32_20 dim 1 : vector<8x256xf32>, i32 -> vector<8x256xf32>
    %c17_i32_21 = arith.constant 17 : i32
    %81 = tpu.dynamic_rotate %2 by %c17_i32_21 dim 1 : vector<1x256xf32>, i32 -> vector<1x256xf32>
    %82 = arith.addf %2, %81 : vector<1x256xf32>
    %83 = arith.subf %79, %0 : vector<8x256xf32>
    %84 = arith.subf %80, %1 : vector<8x256xf32>
    %85 = arith.mulf %83, %83 : vector<8x256xf32>
    %cst_22 = arith.constant 8.100000e-01 : f32
    %86 = vector.broadcast %cst_22 : f32 to vector<8x256xf32>
    %87 = arith.addf %86, %85 : vector<8x256xf32>
    %88 = math.rsqrt %87 : vector<8x256xf32>
    %89 = arith.mulf %83, %88 : vector<8x256xf32>
    %90 = arith.mulf %84, %84 : vector<8x256xf32>
    %cst_23 = arith.constant 8.100000e-01 : f32
    %91 = vector.broadcast %cst_23 : f32 to vector<8x256xf32>
    %92 = arith.addf %91, %90 : vector<8x256xf32>
    %93 = math.rsqrt %92 : vector<8x256xf32>
    %94 = arith.mulf %84, %93 : vector<8x256xf32>
    %95 = arith.subf %89, %94 : vector<8x256xf32>
    %96 = arith.mulf %95, %95 : vector<8x256xf32>
    %cst_24 = arith.constant 1.000000e-01 : f32
    %97 = vector.broadcast %cst_24 : f32 to vector<8x256xf32>
    %98 = arith.addf %97, %96 : vector<8x256xf32>
    %99 = tpu.reciprocal %98 {approx = true} : vector<8x256xf32> -> vector<8x256xf32>
    %100 = arith.mulf %96, %99 : vector<8x256xf32>
    %101 = vector.broadcast %82 : vector<1x256xf32> to vector<8x256xf32>
    %102 = arith.mulf %100, %101 : vector<8x256xf32>
    %103 = arith.addf %78, %102 : vector<8x256xf32>
    %104 = vector.shape_cast %103 : vector<8x256xf32> to vector<1x8x256xf32>
    %cst_25 = arith.constant dense<0.000000e+00> : vector<1xf32>
    %105 = vector.multi_reduction <add>, %104, %cst_25 [1, 2] : vector<1x8x256xf32> to vector<1xf32>
    %106 = vector.shape_cast %105 : vector<1xf32> to vector<1x1x1xf32>
    %107 = vector.extract %106[0, 0, 0] : f32 from vector<1x1x1xf32>
    %108 = vector.broadcast %107 : f32 to vector<1x8x128xf32>
    %c0_26 = arith.constant 0 : index
    %c0_27 = arith.constant 0 : index
    %c0_28 = arith.constant 0 : index
    %109 = vector.load %arg4[%c0_26, %c0_27, %c0_28] : memref<1x8x128xf32, #tpu.memory_space<vmem>>, vector<1x8x128xf32>
    tpu.vector_store %arg4[%c0_26, %c0_27, %c0_28], %108 {strides = array<i32>} : memref<1x8x128xf32, #tpu.memory_space<vmem>>, vector<1x8x128xf32>,
    return
  }
  func.func @transform_0(%arg0: i32) -> (i32, i32) {
    %c0_i32 = arith.constant 0 : i32
    %c0_i32_0 = arith.constant 0 : i32
    return %arg0, %c0_i32 : i32, i32
  }
  func.func @transform_1(%arg0: i32) -> (i32, i32) {
    %c0_i32 = arith.constant 0 : i32
    %c0_i32_0 = arith.constant 0 : i32
    return %arg0, %c0_i32 : i32, i32
  }
  func.func @transform_2(%arg0: i32) -> (i32, i32) {
    %c0_i32 = arith.constant 0 : i32
    %c0_i32_0 = arith.constant 0 : i32
    %c0_i32_1 = arith.constant 0 : i32
    return %c0_i32, %c0_i32_0 : i32, i32
  }
  func.func @transform_3(%arg0: i32) -> (i32, i32, i32) {
    %c0_i32 = arith.constant 0 : i32
    %c0_i32_0 = arith.constant 0 : i32
    %c0_i32_1 = arith.constant 0 : i32
    return %arg0, %c0_i32, %c0_i32_0 : i32, i32, i32
  }
}

</mosaic_0001>

<llo_original>
// kernel: tpu_custom_call.1
$region0: #{tpu_custom_call.1}
  #allocation0 [shape = 'u32[]', space=smem, size = 0x4, offset = 0x4, fixed_abs, tag = 'smem constant byte address 0x4 - core index']
  #allocation1 [shape = 'u32[144,128]{1,0:T(1,128)}', space=vmem, size = 0x12000, scoped, tag = 'internal scratch']
  %s0 = inlined_call_operand.hbm [shape: f32[8,256], index: 0, kind: input, shape index: {}]
  %s1 = inlined_call_operand.hbm [shape: f32[8,256], index: 1, kind: input, shape index: {}]
  %s2 = inlined_call_operand.vmem [shape: f32[1,256], index: 2, kind: input, shape index: {}]
  %s3 = inlined_call_operand.hbm [shape: f32[1,8,128], index: 3, kind: output, shape index: {}]
  %s4 = sld [smem:[#allocation0]]
  $region30: #{tpu_custom_call.1} parent=0
    _
  %s6 = ssub.s32 1, %s4
  %s7 = scalar_select 0, %s6, %s4
  $region1: #{tpu_custom_call.1} parent=0
    #allocation2 [shape = 'u8[8192]{0}', space=vmem, size = 0x2000, scoped, tag = 'input window, operand 0, single buffered']
    #allocation3 [shape = 's32[1]{0}', space=sflag, size = 0x4, scoped, tag = 'scoped memory for tpu_custom_call.1']
    #allocation4 [shape = 's32[1]{0}', space=sflag, size = 0x4, scoped, tag = 'scoped memory for tpu_custom_call.1']
    #allocation5 [shape = 'u8[8192]{0}', space=vmem, size = 0x2000, scoped, tag = 'input window, operand 1, single buffered']
    #allocation6 [shape = 's32[1]{0}', space=sflag, size = 0x4, scoped, tag = 'scoped memory for tpu_custom_call.1']
    #allocation7 [shape = 'u8[4096]{0}', space=vmem, size = 0x1000, scoped, tag = 'output window, operand 0, single buffered']
    %8 = vsyncpa [#allocation3], 0
    %9 = vsyncpa [#allocation6], 0
    %10 = vsyncpa [#allocation4], 0
    // Predicated region
    $region2: #{tpu_custom_call.1} parent=1 // pred_check
      _
    $region3: #{tpu_custom_call.1} parent=1 // pred_check_branch
      %12 = sbr.rel (0) target = $region5
    $region4: #{tpu_custom_call.1} parent=1 // pred_region
      %s14 = ssub.s32 256, 256
      %15 = vsyncadd [#allocation3], %s14
      %s17 = sshll.u32 [#allocation2], 4
      %s18 = int_to_ptr.vmem [resolvable:$true] %s17
      %20 = dma.hbm_to_vmem [thread:$0]  %s0, 256, %s18, [#allocation3]
    $region5: #{tpu_custom_call.1} parent=1 // pred_fallthru
      _
    // Predicated region
    $region6: #{tpu_custom_call.1} parent=1 // pred_check
      _
    $region7: #{tpu_custom_call.1} parent=1 // pred_check_branch
      %22 = sbr.rel (0) target = $region9
    $region8: #{tpu_custom_call.1} parent=1 // pred_region
      %s24 = ssub.s32 256, 256
      %25 = vsyncadd [#allocation6], %s24
      %s27 = sshll.u32 [#allocation5], 4
      %s28 = int_to_ptr.vmem [resolvable:$true] %s27
      %30 = dma.hbm_to_vmem [thread:$0]  %s1, 256, %s28, [#allocation6]
    $region9: #{tpu_custom_call.1} parent=1 // pred_fallthru
      _
    // Predicated region
    $region10: #{tpu_custom_call.1} parent=1 // pred_check
      _
    $region11: #{tpu_custom_call.1} parent=1 // pred_check_branch
      %32 = sbr.rel (0) target = $region13
    $region12: #{tpu_custom_call.1} parent=1 // pred_region
      _
    $region13: #{tpu_custom_call.1} parent=1 // pred_fallthru
      _
    // Predicated region
    $region14: #{tpu_custom_call.1} parent=1 // pred_check
      _
    $region15: #{tpu_custom_call.1} parent=1 // pred_check_branch
      %34 = sbr.rel (0) target = $region17
    $region16: #{tpu_custom_call.1} parent=1 // pred_region
      %35 = dma.done [#allocation3], 256
    $region17: #{tpu_custom_call.1} parent=1 // pred_fallthru
      _
    // Predicated region
    $region18: #{tpu_custom_call.1} parent=1 // pred_check
      _
    $region19: #{tpu_custom_call.1} parent=1 // pred_check_branch
      %37 = sbr.rel (0) target = $region21
    $region20: #{tpu_custom_call.1} parent=1 // pred_region
      %38 = dma.done [#allocation6], 256
    $region21: #{tpu_custom_call.1} parent=1 // pred_fallthru
      _
    %v39 = vld [vmem:[#allocation2] sm:$0xff]
    %v40 = vld [vmem:[#allocation2 + $0x8] sm:$0xff]
    %v41 = vld [vmem:[#allocation5] sm:$0xff]
    %v42 = vld [vmem:[#allocation5 + $0x8] sm:$0xff]
    %v43 = vld [vmem:[%s2] sm:$0x3]
    %44 = vrot.lane.b32.xlu0 %v39, 1
    %v45 = vpop.permute.xlu0 %44
    %46 = vrot.lane.b32.xlu0 %v40, 1
    %v47 = vpop.permute.xlu0 %46
    %v48 = vlaneseq
    %v49 = vand.u32 %v48, 127
    %vm50 = vcmp.lt.s32.totalorder %v49, 1
    %v51 = vsel %vm50, %v45, %v47
    %v52 = vsel %vm50, %v47, %v45
    %53 = vrot.lane.b32.xlu0 %v41, 1
    %v54 = vpop.permute.xlu0 %53
    %55 = vrot.lane.b32.xlu0 %v42, 1
    %v56 = vpop.permute.xlu0 %55
    %v57 = vsel %vm50, %v54, %v56
    %v58 = vsel %vm50, %v56, %v54
    %v60 = vlaneseq
    %v61 = vshrl.u32 %v60, 7
    %v62 = vsub.s32 0, %v61
    %v63 = vrot.slane %v43, %v62
    %v64 = vlaneseq
    %v65 = vshrl.u32 %v64, 7
    %v66 = vsub.s32 1, %v65
    %v67 = vrot.slane %v43, %v66
    %70 = vrot.lane.b32.xlu0 %v63, 1
    %v71 = vpop.permute.xlu0 %70
    %72 = vrot.lane.b32.xlu0 %v67, 1
    %v73 = vpop.permute.xlu0 %72
    %v74 = vsel %vm50, %v71, %v73
    %v75 = vsel %vm50, %v73, %v71
    %v78 = vcombine.low %v75, %v74
    %v80 = vunpack.c.l.s4 1966171168
    %v81 = vunpack.c.0.s8 %v80
    %v82 = vlaneseq
    %v83 = vshrl.u32 %v82, 7
    %v84 = vsub.s32 %v81, %v83
    %v85 = vrot.slane %v78, %v84
    %v87 = vunpack.c.l.s4 1966171168
    %v88 = vunpack.c.0.s8 %v87
    %v89 = vlaneseq
    %v90 = vshrl.u32 %v89, 7
    %v91 = vsub.s32 %v88, %v90
    %v92 = vrot.slane %v85, %v91
    %v94 = vadd.f32 %v43, %v92
    %v95 = vsub.f32 %v52, %v39
    %v96 = vsub.f32 %v51, %v40
    %v97 = vsub.f32 %v58, %v41
    %v98 = vsub.f32 %v57, %v42
    %v99 = vmul.f32 %v95, %v95
    %v100 = vmul.f32 %v96, %v96
    %v101 = vadd.f32 %v99, 0.81
    %v102 = vadd.f32 %v100, 0.81
    %v103 = vrsqrt.pop %v101
    %v104 = vrsqrt.pop %v102
    %v105 = vmul.f32 %v95, %v103
    %v106 = vmul.f32 %v96, %v104
    %v107 = vmul.f32 %v97, %v97
    %v108 = vmul.f32 %v98, %v98
    %v109 = vadd.f32 %v107, 0.81
    %v110 = vadd.f32 %v108, 0.81
    %v111 = vrsqrt.pop %v109
    %v112 = vrsqrt.pop %v110
    %v113 = vmul.f32 %v97, %v111
    %v114 = vmul.f32 %v98, %v112
    %v115 = vsub.f32 %v105, %v113
    %v116 = vsub.f32 %v106, %v114
    %v117 = vmul.f32 %v115, %v115
    %v118 = vmul.f32 %v116, %v116
    %v119 = vadd.f32 %v117, 0.1
    %v120 = vadd.f32 %v118, 0.1
    %v121 = vrcp.pop %v119
    %v122 = vrcp.pop %v120
    %v123 = vmul.f32 %v117, %v121
    %v124 = vmul.f32 %v118, %v122
    %v126 = vlaneseq
    %v127 = vshrl.u32 %v126, 7
    %v128 = vsub.s32 0, %v127
    %v129 = vrot.slane %v94, %v128
    %v130 = vlaneseq
    %v131 = vshrl.u32 %v130, 7
    %v132 = vsub.s32 1, %v131
    %v133 = vrot.slane %v94, %v132
    %v136 = vmul.f32 %v123, %v129
    %v137 = vmul.f32 %v124, %v133
    %v138 = vadd.f32 %v136, 0.0
    %v139 = vadd.f32 %v137, 0.0
    %140 = vrot.lane.b32.xlu0 %v39, 15
    %v141 = vpop.permute.xlu0 %140
    %142 = vrot.lane.b32.xlu0 %v40, 15
    %v143 = vpop.permute.xlu0 %142
    %vm144 = vcmp.lt.s32.totalorder %v49, 15
    %v145 = vsel %vm144, %v141, %v143
    %v146 = vsel %vm144, %v143, %v141
    %147 = vrot.lane.b32.xlu0 %v41, 15
    %v148 = vpop.permute.xlu0 %147
    %149 = vrot.lane.b32.xlu0 %v42, 15
    %v150 = vpop.permute.xlu0 %149
    %v151 = vsel %vm144, %v148, %v150
    %v152 = vsel %vm144, %v150, %v148
    %153 = vrot.lane.b32.xlu0 %v63, 15
    %v154 = vpop.permute.xlu0 %153
    %155 = vrot.lane.b32.xlu0 %v67, 15
    %v156 = vpop.permute.xlu0 %155
    %v157 = vsel %vm144, %v154, %v156
    %v158 = vsel %vm144, %v156, %v154
    %v161 = vcombine.low %v158, %v157
    %v163 = vunpack.c.l.s4 1966171168
    %v164 = vunpack.c.0.s8 %v163
    %v165 = vlaneseq
    %v166 = vshrl.u32 %v165, 7
    %v167 = vsub.s32 %v164, %v166
    %v168 = vrot.slane %v161, %v167
    %v170 = vunpack.c.l.s4 1966171168
    %v171 = vunpack.c.0.s8 %v170
    %v172 = vlaneseq
    %v173 = vshrl.u32 %v172, 7
    %v174 = vsub.s32 %v171, %v173
    %v175 = vrot.slane %v168, %v174
    %v177 = vadd.f32 %v43, %v175
    %v178 = vsub.f32 %v146, %v39
    %v179 = vsub.f32 %v145, %v40
    %v180 = vsub.f32 %v152, %v41
    %v181 = vsub.f32 %v151, %v42
    %v182 = vmul.f32 %v178, %v178
    %v183 = vmul.f32 %v179, %v179
    %v184 = vadd.f32 %v182, 0.81
    %v185 = vadd.f32 %v183, 0.81
    %v186 = vrsqrt.pop %v184
    %v187 = vrsqrt.pop %v185
    %v188 = vmul.f32 %v178, %v186
    %v189 = vmul.f32 %v179, %v187
    %v190 = vmul.f32 %v180, %v180
    %v191 = vmul.f32 %v181, %v181
    %v192 = vadd.f32 %v190, 0.81
    %v193 = vadd.f32 %v191, 0.81
    %v194 = vrsqrt.pop %v192
    %v195 = vrsqrt.pop %v193
    %v196 = vmul.f32 %v180, %v194
    %v197 = vmul.f32 %v181, %v195
    %v198 = vsub.f32 %v188, %v196
    %v199 = vsub.f32 %v189, %v197
    %v200 = vmul.f32 %v198, %v198
    %v201 = vmul.f32 %v199, %v199
    %v202 = vadd.f32 %v200, 0.1
    %v203 = vadd.f32 %v201, 0.1
    %v204 = vrcp.pop %v202
    %v205 = vrcp.pop %v203
    %v206 = vmul.f32 %v200, %v204
    %v207 = vmul.f32 %v201, %v205
    %v209 = vlaneseq
    %v210 = vshrl.u32 %v209, 7
    %v211 = vsub.s32 0, %v210
    %v212 = vrot.slane %v177, %v211
    %v213 = vlaneseq
    %v214 = vshrl.u32 %v213, 7
    %v215 = vsub.s32 1, %v214
    %v216 = vrot.slane %v177, %v215
    %v219 = vmul.f32 %v206, %v212
    %v220 = vmul.f32 %v207, %v216
    %v221 = vadd.f32 %v138, %v219
    %v222 = vadd.f32 %v139, %v220
    %223 = vrot.lane.b32.xlu0 %v39, 16
    %v224 = vpop.permute.xlu0 %223
    %225 = vrot.lane.b32.xlu0 %v40, 16
    %v226 = vpop.permute.xlu0 %225
    %vm227 = vcmp.lt.s32.totalorder %v49, 16
    %v228 = vsel %vm227, %v224, %v226
    %v229 = vsel %vm227, %v226, %v224
    %230 = vrot.lane.b32.xlu0 %v41, 16
    %v231 = vpop.permute.xlu0 %230
    %232 = vrot.lane.b32.xlu0 %v42, 16
    %v233 = vpop.permute.xlu0 %232
    %v234 = vsel %vm227, %v231, %v233
    %v235 = vsel %vm227, %v233, %v231
    %236 = vrot.lane.b32.xlu0 %v63, 16
    %v237 = vpop.permute.xlu0 %236
    %238 = vrot.lane.b32.xlu0 %v67, 16
    %v239 = vpop.permute.xlu0 %238
    %v240 = vsel %vm227, %v237, %v239
    %v241 = vsel %vm227, %v239, %v237
    %v244 = vcombine.low %v241, %v240
    %v246 = vunpack.c.l.s4 1966171168
    %v247 = vunpack.c.0.s8 %v246
    %v248 = vlaneseq
    %v249 = vshrl.u32 %v248, 7
    %v250 = vsub.s32 %v247, %v249
    %v251 = vrot.slane %v244, %v250
    %v253 = vunpack.c.l.s4 1966171168
    %v254 = vunpack.c.0.s8 %v253
    %v255 = vlaneseq
    %v256 = vshrl.u32 %v255, 7
    %v257 = vsub.s32 %v254, %v256
    %v258 = vrot.slane %v251, %v257
    %v260 = vadd.f32 %v43, %v258
    %v261 = vsub.f32 %v229, %v39
    %v262 = vsub.f32 %v228, %v40
    %v263 = vsub.f32 %v235, %v41
    %v264 = vsub.f32 %v234, %v42
    %v265 = vmul.f32 %v261, %v261
    %v266 = vmul.f32 %v262, %v262
    %v267 = vadd.f32 %v265, 0.81
    %v268 = vadd.f32 %v266, 0.81
    %v269 = vrsqrt.pop %v267
    %v270 = vrsqrt.pop %v268
    %v271 = vmul.f32 %v261, %v269
    %v272 = vmul.f32 %v262, %v270
    %v273 = vmul.f32 %v263, %v263
    %v274 = vmul.f32 %v264, %v264
    %v275 = vadd.f32 %v273, 0.81
    %v276 = vadd.f32 %v274, 0.81
    %v277 = vrsqrt.pop %v275
    %v278 = vrsqrt.pop %v276
    %v279 = vmul.f32 %v263, %v277
    %v280 = vmul.f32 %v264, %v278
    %v281 = vsub.f32 %v271, %v279
    %v282 = vsub.f32 %v272, %v280
    %v283 = vmul.f32 %v281, %v281
    %v284 = vmul.f32 %v282, %v282
    %v285 = vadd.f32 %v283, 0.1
    %v286 = vadd.f32 %v284, 0.1
    %v287 = vrcp.pop %v285
    %v288 = vrcp.pop %v286
    %v289 = vmul.f32 %v283, %v287
    %v290 = vmul.f32 %v284, %v288
    %v292 = vlaneseq
    %v293 = vshrl.u32 %v292, 7
    %v294 = vsub.s32 0, %v293
    %v295 = vrot.slane %v260, %v294
    %v296 = vlaneseq
    %v297 = vshrl.u32 %v296, 7
    %v298 = vsub.s32 1, %v297
    %v299 = vrot.slane %v260, %v298
    %v302 = vmul.f32 %v289, %v295
    %v303 = vmul.f32 %v290, %v299
    %v304 = vadd.f32 %v221, %v302
    %v305 = vadd.f32 %v222, %v303
    %306 = vrot.lane.b32.xlu0 %v39, 17
    %v307 = vpop.permute.xlu0 %306
    %308 = vrot.lane.b32.xlu0 %v40, 17
    %v309 = vpop.permute.xlu0 %308
    %vm310 = vcmp.lt.s32.totalorder %v49, 17
    %v311 = vsel %vm310, %v307, %v309
    %v312 = vsel %vm310, %v309, %v307
    %313 = vrot.lane.b32.xlu0 %v41, 17
    %v314 = vpop.permute.xlu0 %313
    %315 = vrot.lane.b32.xlu0 %v42, 17
    %v316 = vpop.permute.xlu0 %315
    %v317 = vsel %vm310, %v314, %v316
    %v318 = vsel %vm310, %v316, %v314
    %319 = vrot.lane.b32.xlu0 %v63, 17
    %v320 = vpop.permute.xlu0 %319
    %321 = vrot.lane.b32.xlu0 %v67, 17
    %v322 = vpop.permute.xlu0 %321
    %v323 = vsel %vm310, %v320, %v322
    %v324 = vsel %vm310, %v322, %v320
    %v327 = vcombine.low %v324, %v323
    %v329 = vunpack.c.l.s4 1966171168
    %v330 = vunpack.c.0.s8 %v329
    %v331 = vlaneseq
    %v332 = vshrl.u32 %v331, 7
    %v333 = vsub.s32 %v330, %v332
    %v334 = vrot.slane %v327, %v333
    %v336 = vunpack.c.l.s4 1966171168
    %v337 = vunpack.c.0.s8 %v336
    %v338 = vlaneseq
    %v339 = vshrl.u32 %v338, 7
    %v340 = vsub.s32 %v337, %v339
    %v341 = vrot.slane %v334, %v340
    %v343 = vadd.f32 %v43, %v341
    %v344 = vsub.f32 %v312, %v39
    %v345 = vsub.f32 %v311, %v40
    %v346 = vsub.f32 %v318, %v41
    %v347 = vsub.f32 %v317, %v42
    %v348 = vmul.f32 %v344, %v344
    %v349 = vmul.f32 %v345, %v345
    %v350 = vadd.f32 %v348, 0.81
    %v351 = vadd.f32 %v349, 0.81
    %v352 = vrsqrt.pop %v350
    %v353 = vrsqrt.pop %v351
    %v354 = vmul.f32 %v344, %v352
    %v355 = vmul.f32 %v345, %v353
    %v356 = vmul.f32 %v346, %v346
    %v357 = vmul.f32 %v347, %v347
    %v358 = vadd.f32 %v356, 0.81
    %v359 = vadd.f32 %v357, 0.81
    %v360 = vrsqrt.pop %v358
    %v361 = vrsqrt.pop %v359
    %v362 = vmul.f32 %v346, %v360
    %v363 = vmul.f32 %v347, %v361
    %v364 = vsub.f32 %v354, %v362
    %v365 = vsub.f32 %v355, %v363
    %v366 = vmul.f32 %v364, %v364
    %v367 = vmul.f32 %v365, %v365
    %v368 = vadd.f32 %v366, 0.1
    %v369 = vadd.f32 %v367, 0.1
    %v370 = vrcp.pop %v368
    %v371 = vrcp.pop %v369
    %v372 = vmul.f32 %v366, %v370
    %v373 = vmul.f32 %v367, %v371
    %v375 = vlaneseq
    %v376 = vshrl.u32 %v375, 7
    %v377 = vsub.s32 0, %v376
    %v378 = vrot.slane %v343, %v377
    %v379 = vlaneseq
    %v380 = vshrl.u32 %v379, 7
    %v381 = vsub.s32 1, %v380
    %v382 = vrot.slane %v343, %v381
    %v385 = vmul.f32 %v372, %v378
    %v386 = vmul.f32 %v373, %v382
    %v387 = vadd.f32 %v304, %v385
    %v388 = vadd.f32 %v305, %v386
    %v389 = vadd.f32 %v387, %v388
    %390 = vadd.xlane.f32.xlu0 %v389
    %v391 = vpop.xlane.xlu0 %390
    %v392 = vrot.slane %v391, 4
    %v393 = vadd.f32 %v391, %v392
    %v394 = vrot.slane %v393, 2
    %v395 = vadd.f32 %v393, %v394
    %v396 = vrot.slane %v395, 1
    %v397 = vadd.f32 %v395, %v396
    %s398 = vtos %v397
    %v399 = vstv %s398
    %400 = vst [vmem:[#allocation7] sm:$0xff] %v399
    // Predicated region
    $region22: #{tpu_custom_call.1} parent=1 // pred_check
      _
    $region23: #{tpu_custom_call.1} parent=1 // pred_check_branch
      %402 = sbr.rel (0) target = $region25
    $region24: #{tpu_custom_call.1} parent=1 // pred_region
      %s404 = ssub.s32 128, 128
      %405 = vsyncadd [#allocation4], %s404
      %s407 = sshll.u32 [#allocation7], 4
      %s408 = int_to_ptr.vmem [resolvable:$true] %s407
      %410 = dma.vmem_to_hbm [thread:$0]  %s408, 128, %s3, [#allocation4]
    $region25: #{tpu_custom_call.1} parent=1 // pred_fallthru
      _
    // Predicated region
    $region26: #{tpu_custom_call.1} parent=1 // pred_check
      _
    $region27: #{tpu_custom_call.1} parent=1 // pred_check_branch
      %412 = sbr.rel (0) target = $region29
    $region28: #{tpu_custom_call.1} parent=1 // pred_region
      %413 = dma.done [#allocation4], 128
    $region29: #{tpu_custom_call.1} parent=1 // pred_fallthru
      _
    %414 = vsyncpa [#allocation3], 1
    %415 = vsyncpa [#allocation6], 1
    %416 = vsyncpa [#allocation4], 1

</llo_original>
